<compile_context>
chip_gen: v5e
topology: v5e:2x2
jax: 0.10.0
libtpu: 0.0.40
codegen_flags: <defaults>
</compile_context>

<pallas_src>
import numpy as np
import jax
import jax.numpy as jnp
from jax.experimental import pallas as pl
from jax.experimental.pallas import tpu as pltpu

TILE = 4  # tile size used by DKD.tiled_detect_keypoints


# ----------------------------------------------------------------------------
# Kernel A: per-4x4-tile max / first-occurrence argmax (border already zeroed)
# ----------------------------------------------------------------------------
def _tile_max_kernel(x_ref, val_ref, arg_ref):
    x = x_ref[...]                                            # (16, BW) f32
    kk = x.shape[0]
    m = jnp.max(x, axis=0, keepdims=True)                     # XLU reduce
    k_idx = jax.lax.broadcasted_iota(jnp.int32, x.shape, 0)   # within-tile idx
    hit = jnp.where(x == m, k_idx, jnp.int32(kk))
    val_ref[...] = m
    arg_ref[...] = jnp.min(hit, axis=0, keepdims=True)        # first occurrence


def _pick_lane_block(n, target=8192):
    """Largest lane-block (multiple of 128) dividing n, capped at `target`."""
    if n <= target:
        return n
    bw = (target // 128) * 128
    while n % bw:
        bw -= 128
    return bw


def tiled_max(scores_hw, radius):
    """Returns (tile max values, within-tile argmax) as flat (NT,) arrays."""
    H, W = scores_hw.shape
    TH, TW = H // TILE, W // TILE
    NT = TH * TW
    KK = TILE * TILE

    # Static border keep-mask (depends only on H, W, radius); fused by XLA
    # with the tile rearrangement -> no in-kernel integer div/mod.
    keep = np.ones((H, W), dtype=bool)
    keep[: radius + 1, :] = False
    keep[:, : radius + 1] = False
    keep[H - radius:, :] = False
    keep[:, W - radius:] = False
    s = jnp.where(jnp.asarray(keep), scores_hw.astype(jnp.float32),
                  jnp.float32(0.0))

    # (H, W) -> (16, NT): within-tile idx on sublanes, tile idx on lanes.
    x = s.reshape(TH, TILE, TW, TILE).transpose(1, 3, 0, 2).reshape(KK, NT)

    # Pad lanes to a multiple of 128 so output stores are unmasked vst.
    NT_pad = ((NT + 127) // 128) * 128
    if NT_pad != NT:
        x = jnp.pad(x, ((0, 0), (0, NT_pad - NT)),
                    constant_values=-jnp.inf)

    BW = _pick_lane_block(NT_pad)
    grid = (NT_pad // BW,)

    vals, args = pl.pallas_call(
        _tile_max_kernel,
        grid=grid,
        in_specs=[pl.BlockSpec((KK, BW), lambda j: (0, j))],
        out_specs=(pl.BlockSpec((1, BW), lambda j: (0, j)),
                   pl.BlockSpec((1, BW), lambda j: (0, j))),
        out_shape=(jax.ShapeDtypeStruct((1, NT_pad), jnp.float32),
                   jax.ShapeDtypeStruct((1, NT_pad), jnp.int32)),
        compiler_params=pltpu.CompilerParams(
            dimension_semantics=("parallel",)),
    )(x)
    return vals[0, :NT], args[0, :NT]


# ----------------------------------------------------------------------------
# Kernel B: per-keypoint L2 normalization of the gathered (K, C) descriptors
# ----------------------------------------------------------------------------
def _l2norm_kernel(d_ref, o_ref):
    d = d_ref[...].astype(jnp.float32)
    ss = jnp.sum(d * d, axis=-1, keepdims=True)
    inv = jax.lax.rsqrt(jnp.maximum(ss, jnp.float32(1e-24)))   # EUP rsqrt + eps
    o_ref[...] = d * inv


def l2_normalize(desc_kc):
    K, C = desc_kc.shape
    return pl.pallas_call(
        _l2norm_kernel,
        out_shape=jax.ShapeDtypeStruct((K, C), jnp.float32),
    )(desc_kc.astype(jnp.float32))


# ----------------------------------------------------------------------------
# DKD forward (default detector='tiled')
# ----------------------------------------------------------------------------
class DKDPallas:
    def __init__(self, radius=2, top_k=500, scores_th=0.5, n_limit=5000,
                 detector='tiled'):
        self.radius = radius
        self.top_k = top_k
        self.scores_th = scores_th
        self.n_limit = n_limit
        self.detector_type = detector
        # TODO(synk): 'maxpool' detector branch (simplest_nms + grid_sample +
        # threshold mode) is not exercised by the default forward and is not
        # implemented here.

    def __call__(self, scores_map, descriptor_map):
        H, W = scores_map.shape[-2], scores_map.shape[-1]
        C = descriptor_map.shape[1]
        TH, TW = H // TILE, W // TILE

        vals, args = tiled_max(scores_map[0, 0], self.radius)   # (NT,), (NT,)

        # top-k (reference is np.argsort tail -> ascending by score).
        # Note: tie-breaking may differ from numpy's unstable quicksort.
        top_vals_desc, sel_desc = jax.lax.top_k(vals, self.top_k)
        sel = sel_desc[::-1]
        top_vals = top_vals_desc[::-1]

        # Reconstruct global coordinates for only the K selected tiles.
        kk = args[sel]
        tile_r = sel // TW
        tile_c = sel % TW
        rows = tile_r * TILE + kk // TILE
        cols = tile_c * TILE + kk % TILE
        keypoints_xy = jnp.stack([cols, rows], axis=1)           # (K, 2) (x, y)

        # Gather only the K descriptor columns from the native (C, H*W) layout
        # (no full H*W x C transpose), then normalize in Pallas.
        flat_idx = rows * W + cols
        desc_ck = jnp.take(descriptor_map[0].reshape(C, H * W), flat_idx,
                           axis=1)                               # (C, K)
        descriptors = l2_normalize(desc_ck.T)                    # (K, C)

        return keypoints_xy, descriptors, top_vals


if __name__ == "__main__":
    key = jax.random.PRNGKey(0)
    k1, k2 = jax.random.split(key)

    H = W = 32
    C = 32
    TOP_K = 32
    RADIUS = 2

    scores_map = jax.random.uniform(k1, (1, 1, H, W), dtype=jnp.float32)
    descriptor_map = jax.random.normal(k2, (1, C, H, W), dtype=jnp.float32)

    dkd = DKDPallas(radius=RADIUS, top_k=TOP_K)
    kpts, descs, kptscores = dkd(scores_map, descriptor_map)
    (kpts, descs, kptscores) = jax.block_until_ready((kpts, descs, kptscores))

    # ---- numpy reference (mirrors the PyTorch module semantics) ----
    s = np.array(scores_map)[0, 0].copy()
    s[:RADIUS + 1, :] = 0
    s[:, :RADIUS + 1] = 0
    s[H - RADIUS:, :] = 0
    s[:, W - RADIUS:] = 0
    TH, TW = H // TILE, W // TILE
    tiles = s.reshape(TH, TILE, TW, TILE).swapaxes(1, 2).reshape(TH, TW, TILE * TILE)
    am = np.argmax(tiles, axis=2)
    vals_ref = np.take_along_axis(tiles, am[:, :, None], axis=2).squeeze(-1)
    gr = (np.arange(TH) * TILE)[:, None] + am // TILE
    gc = (np.arange(TW) * TILE) + am % TILE
    flat = np.argsort(vals_ref.ravel())[-TOP_K:]
    tv = vals_ref.ravel()[flat]
    tr = gr.ravel()[flat]
    tc = gc.ravel()[flat]
    kref = np.stack([tc, tr], axis=1)
    d = np.array(descriptor_map)[0][:, tr, tc]                 # (C, K)
    dref = (d / np.linalg.norm(d, axis=0, keepdims=True)).T    # (K, C)

    assert np.allclose(np.array(kptscores), tv, atol=1e-6), "kptscores mismatch"
    assert np.array_equal(np.array(kpts), kref), "keypoints mismatch"
    assert np.allclose(np.array(descs), dref, atol=1e-4), "descriptors mismatch"

    print("KERNEL_OK")
</pallas_src>

<mosaic_0001>
module attributes {stable_mosaic.version = 11 : i64} {
  func.func @_tile_max_kernel(%arg0: i32, %arg1: memref<16x128xf32, #tpu.memory_space<vmem>>, %arg2: memref<1x128xf32, #tpu.memory_space<vmem>>, %arg3: memref<1x128xi32, #tpu.memory_space<vmem>>) attributes {dimension_semantics = [#tpu.dimension_semantics<parallel>], iteration_bounds = array<i64: 1>, scalar_prefetch = 0 : i64, scratch_operands = 0 : i64, tpu.core_type = #tpu.core_type<tc>, window_params = [{transform_indices = @transform_0, window_bounds = array<i64: 16, 128>}, {transform_indices = @transform_1, window_bounds = array<i64: 1, 128>}, {transform_indices = @transform_2, window_bounds = array<i64: 1, 128>}]} {
    %c0 = arith.constant 0 : index
    %c0_0 = arith.constant 0 : index
    %0 = vector.load %arg1[%c0, %c0_0] : memref<16x128xf32, #tpu.memory_space<vmem>>, vector<16x128xf32>
    %cst = arith.constant dense<0xFF800000> : vector<128xf32>
    %1 = vector.multi_reduction <maximumf>, %0, %cst [0] : vector<16x128xf32> to vector<128xf32>
    %2 = vector.shape_cast %1 : vector<128xf32> to vector<1x128xf32>
    %3 = tpu.iota {dimensions = array<i32: 0>} : vector<16x128xi32>
    %4 = vector.broadcast %2 : vector<1x128xf32> to vector<16x128xf32>
    %5 = arith.cmpf oeq, %0, %4 : vector<16x128xf32>
    %c16_i32 = arith.constant 16 : i32
    %6 = vector.broadcast %c16_i32 : i32 to vector<16x128xi32>
    %7 = arith.select %5, %3, %6 : vector<16x128xi1>, vector<16x128xi32>
    %c0_1 = arith.constant 0 : index
    %c0_2 = arith.constant 0 : index
    %8 = vector.load %arg2[%c0_1, %c0_2] : memref<1x128xf32, #tpu.memory_space<vmem>>, vector<1x128xf32>
    tpu.vector_store %arg2[%c0_1, %c0_2], %2 {strides = array<i32>} : memref<1x128xf32, #tpu.memory_space<vmem>>, vector<1x128xf32>,
    %cst_3 = arith.constant dense<2147483647> : vector<128xi32>
    %9 = vector.multi_reduction <minsi>, %7, %cst_3 [0] : vector<16x128xi32> to vector<128xi32>
    %10 = vector.shape_cast %9 : vector<128xi32> to vector<1x128xi32>
    %c0_4 = arith.constant 0 : index
    %c0_5 = arith.constant 0 : index
    %11 = vector.load %arg3[%c0_4, %c0_5] : memref<1x128xi32, #tpu.memory_space<vmem>>, vector<1x128xi32>
    tpu.vector_store %arg3[%c0_4, %c0_5], %10 {strides = array<i32>} : memref<1x128xi32, #tpu.memory_space<vmem>>, vector<1x128xi32>,
    return
  }
  func.func @transform_0(%arg0: i32) -> (i32, i32) {
    %c0_i32 = arith.constant 0 : i32
    %c0_i32_0 = arith.constant 0 : i32
    return %c0_i32, %arg0 : i32, i32
  }
  func.func @transform_1(%arg0: i32) -> (i32, i32) {
    %c0_i32 = arith.constant 0 : i32
    %c0_i32_0 = arith.constant 0 : i32
    return %c0_i32, %arg0 : i32, i32
  }
  func.func @transform_2(%arg0: i32) -> (i32, i32) {
    %c0_i32 = arith.constant 0 : i32
    %c0_i32_0 = arith.constant 0 : i32
    return %c0_i32, %arg0 : i32, i32
  }
}

</mosaic_0001>

<llo_original>
// kernel: tpu_custom_call.1
$region0: #{tpu_custom_call.1}
  #allocation0 [shape = 'u32[]', space=smem, size = 0x4, offset = 0x4, fixed_abs, tag = 'smem constant byte address 0x4 - core index']
  #allocation1 [shape = 'u32[72,128]{1,0:T(1,128)}', space=vmem, size = 0x9000, scoped, tag = 'internal scratch']
  %s0 = inlined_call_operand.hbm [shape: f32[16,128], index: 0, kind: input, shape index: {}]
  %s1 = inlined_call_operand.hbm [shape: f32[1,128], index: 1, kind: output, shape index: {0}]
  %s2 = inlined_call_operand.hbm [shape: s32[1,128], index: 2, kind: output, shape index: {1}]
  %3 = xla_tuple %s1, %s2
  %s4 = sld [smem:[#allocation0]]
  $region26: #{tpu_custom_call.1} parent=0
    _
  %s6 = ssub.s32 1, %s4
  %s7 = scalar_select 0, %s6, %s4
  $region1: #{tpu_custom_call.1} parent=0
    #allocation2 [shape = 'u8[8192]{0}', space=vmem, size = 0x2000, scoped, tag = 'input window, operand 0, single buffered']
    #allocation3 [shape = 's32[1]{0}', space=sflag, size = 0x4, scoped, tag = 'scoped memory for tpu_custom_call.1']
    #allocation4 [shape = 's32[1]{0}', space=sflag, size = 0x4, scoped, tag = 'scoped memory for tpu_custom_call.1']
    #allocation5 [shape = 'u8[512]{0}', space=vmem, size = 0x400, scoped, tag = 'output window, operand 0, single buffered']
    #allocation6 [shape = 'u8[512]{0}', space=vmem, size = 0x400, scoped, tag = 'output window, operand 1, single buffered']
    #allocation7 [shape = 's32[1]{0}', space=sflag, size = 0x4, scoped, tag = 'scoped memory for tpu_custom_call.1']
    %8 = vsyncpa [#allocation3], 0
    %9 = vsyncpa [#allocation4], 0
    %10 = vsyncpa [#allocation7], 0
    // Predicated region
    $region2: #{tpu_custom_call.1} parent=1 // pred_check
      _
    $region3: #{tpu_custom_call.1} parent=1 // pred_check_branch
      %12 = sbr.rel (0) target = $region5
    $region4: #{tpu_custom_call.1} parent=1 // pred_region
      %14 = vsyncadd [#allocation3], 0
      %s15 = sshll.u32 %s0, 4
      %s16 = int_to_ptr.hbm [resolvable:$true] %s15
      %s17 = sshll.u32 [#allocation2], 4
      %s18 = int_to_ptr.vmem [resolvable:$true] %s17
      %23 = dma.hbm_to_vmem [thread:$0]  %s16, 256, %s18, [#allocation3], 128, 128, 8
    $region5: #{tpu_custom_call.1} parent=1 // pred_fallthru
      _
    // Predicated region
    $region6: #{tpu_custom_call.1} parent=1 // pred_check
      _
    $region7: #{tpu_custom_call.1} parent=1 // pred_check_branch
      %25 = sbr.rel (0) target = $region9
    $region8: #{tpu_custom_call.1} parent=1 // pred_region
      %27 = dma.done [#allocation3], 256
    $region9: #{tpu_custom_call.1} parent=1 // pred_fallthru
      _
    %v28 = vld [vmem:[#allocation2] sm:$0xff]
    %v29 = vld [vmem:[#allocation2 + $0x8] sm:$0xff]
    %v30 = vmax.f32 %v28, %v29
    %v31 = vrot.slane %v30, 4
    %v32 = vmax.f32 %v30, %v31
    %v33 = vrot.slane %v32, 2
    %v34 = vmax.f32 %v32, %v33
    %v35 = vrot.slane %v34, 1
    %v36 = vmax.f32 %v34, %v35
    %v37 = vlaneseq
    %v38 = vshrl.u32 %v37, 7
    %v39 = vadd.s32 %v38, 8
    %vm40 = vcmp.eq.f32.partialorder %v28, %v36
    %vm41 = vcmp.eq.f32.partialorder %v29, %v36
    %v42 = vsel %vm40, %v38, 16
    %v43 = vsel %vm41, %v39, 16
    %44 = vst [vmem:[#allocation5] sm:$0x1] %v36
    %vm45 = vcmp.lt.s32.totalorder %v42, %v43
    %v46 = vsel %vm45, %v42, %v43
    %v47 = vrot.slane %v46, 4
    %vm48 = vcmp.lt.s32.totalorder %v46, %v47
    %v49 = vsel %vm48, %v46, %v47
    %v50 = vrot.slane %v49, 2
    %vm51 = vcmp.lt.s32.totalorder %v49, %v50
    %v52 = vsel %vm51, %v49, %v50
    %v53 = vrot.slane %v52, 1
    %vm54 = vcmp.lt.s32.totalorder %v52, %v53
    %v55 = vsel %vm54, %v52, %v53
    %56 = vst [vmem:[#allocation6] sm:$0x1] %v55
    // Predicated region
    $region10: #{tpu_custom_call.1} parent=1 // pred_check
      _
    $region11: #{tpu_custom_call.1} parent=1 // pred_check_branch
      %58 = sbr.rel (0) target = $region13
    $region12: #{tpu_custom_call.1} parent=1 // pred_region
      %60 = vsyncadd [#allocation4], 0
      %s62 = sshll.u32 [#allocation5], 4
      %s63 = int_to_ptr.vmem [resolvable:$true] %s62
      %s64 = sshll.u32 %s1, 4
      %s65 = int_to_ptr.hbm [resolvable:$true] %s64
      %67 = dma.vmem_to_hbm [thread:$0]  %s63, 16, %s65, [#allocation4]
    $region13: #{tpu_custom_call.1} parent=1 // pred_fallthru
      _
    // Predicated region
    $region14: #{tpu_custom_call.1} parent=1 // pred_check
      _
    $region15: #{tpu_custom_call.1} parent=1 // pred_check_branch
      %69 = sbr.rel (0) target = $region17
    $region16: #{tpu_custom_call.1} parent=1 // pred_region
      %71 = vsyncadd [#allocation7], 0
      %s73 = sshll.u32 [#allocation6], 4
      %s74 = int_to_ptr.vmem [resolvable:$true] %s73
      %s75 = sshll.u32 %s2, 4
      %s76 = int_to_ptr.hbm [resolvable:$true] %s75
      %78 = dma.vmem_to_hbm [thread:$0]  %s74, 16, %s76, [#allocation7]
    $region17: #{tpu_custom_call.1} parent=1 // pred_fallthru
      _
    // Predicated region
    $region18: #{tpu_custom_call.1} parent=1 // pred_check
      _
    $region19: #{tpu_custom_call.1} parent=1 // pred_check_branch
      %80 = sbr.rel (0) target = $region21
    $region20: #{tpu_custom_call.1} parent=1 // pred_region
      %82 = dma.done [#allocation4], 16
    $region21: #{tpu_custom_call.1} parent=1 // pred_fallthru
      _
    // Predicated region
    $region22: #{tpu_custom_call.1} parent=1 // pred_check
      _
    $region23: #{tpu_custom_call.1} parent=1 // pred_check_branch
      %84 = sbr.rel (0) target = $region25
    $region24: #{tpu_custom_call.1} parent=1 // pred_region
      %86 = dma.done [#allocation7], 16
    $region25: #{tpu_custom_call.1} parent=1 // pred_fallthru
      _
    %87 = vsyncpa [#allocation3], 1
    %88 = vsyncpa [#allocation4], 1
    %89 = vsyncpa [#allocation7], 1

</llo_original>
